<compile_context>
chip_gen: v7x
topology: tpu7x:2x2x1
jax: 0.10.0
libtpu: 0.0.40
codegen_flags: <defaults>
</compile_context>

<pallas_src>
import math

import jax
import jax.numpy as jnp
from jax.experimental import pallas as pl
from jax.experimental.pallas import tpu as pltpu


def _pe_add_kernel(x_ref, pe_ref, o_ref):
    # x_ref/o_ref: (row_tile, lane_width) slab; pe_ref: (1, lane_width) row
    # broadcast over the sublane (row) dimension.
    o_ref[...] = x_ref[...] + pe_ref[...]


def make_pe_buffer(d_model, max_len=5000, dtype=jnp.float32):
    """Deterministic construction of the PE buffer, matching the torch __init__."""
    position = jnp.arange(0, max_len, dtype=jnp.float32)[:, None]             # (max_len, 1)
    div_term = jnp.exp(
        jnp.arange(0, d_model, 2, dtype=jnp.float32) * (-math.log(10000.0) / d_model)
    )                                                                          # (d_model//2,)
    pe = jnp.zeros((max_len, d_model), dtype=jnp.float32)
    pe = pe.at[:, 0::2].set(jnp.sin(position * div_term))
    pe = pe.at[:, 1::2].set(jnp.cos(position * div_term))
    pe = pe[:, None, :]  # pe.unsqueeze(0).transpose(0, 1) -> (max_len, 1, d_model)
    return pe.astype(dtype)


# Below this size, kernel launch + pipeline setup costs more than the add itself.
_MIN_PALLAS_BYTES = 256 * 1024
# Per-buffer tile budget. x-in + out, double-buffered -> ~4x this resident in
# VMEM, which fits v5e's 16 MiB scoped default and v7x's 64 MiB physical VMEM.
_TILE_BYTES = 2 * 1024 * 1024
_MAX_LANE_WIDTH = 8192


def positional_encoding_forward(x, pe, dropout_p=0.1, *, force_pallas=False):
    """x: (S, B, D) (seq_len, batch, d_model, batch_first=False); pe: (max_len, 1, D)."""
    S, B, D = x.shape
    # Exactly `self.pe[x.size(0), :]` -> shape (1, D), broadcast over seq and batch.
    # NOTE: jnp clamps index S to max_len-1 instead of raising like torch would if S >= max_len.
    pe_row = pe[S, :].astype(x.dtype).reshape(1, D)

    itemsize = jnp.dtype(x.dtype).itemsize
    if (x.size * itemsize < _MIN_PALLAS_BYTES) and not force_pallas:
        # Tiny problem: let XLA fuse the broadcast add at memory speed.
        # TODO(synk): training-mode dropout (p=dropout_p) not implemented; eval-mode identity.
        return x + pe_row[None]

    # ---- Lane-dense layout: view the flattened tensor as (n_rows, lane_width)
    #      with lane_width a multiple of 128 (unmasked stores) AND of D (so the
    #      PE row tiles exactly across each slab row). ----
    g = (D * 128 // math.gcd(D, 128)) // D           # lcm(D, 128) / D
    if g * D > _MAX_LANE_WIDTH:
        g = 1                                         # pathological D: accept masked stores
    lane_width = g * D
    pe_slab = jnp.tile(pe_row, (1, g))                # (1, lane_width)

    n_elems = S * B * D
    n_rows = pl.cdiv(n_elems, lane_width)

    # dtype-aware sublane multiple (f32:8, bf16:16, int8/fp8:32)
    sublane = {4: 8, 2: 16, 1: 32}.get(itemsize, 8)

    # Largest row tile under the per-buffer budget, multiple of the sublane,
    # capped at the (rounded-up) total row count so tiny inputs stay one block.
    rows_cap = max(sublane, (_TILE_BYTES // (lane_width * itemsize)) // sublane * sublane)
    total_rows_rounded = pl.cdiv(n_rows, sublane) * sublane
    row_tile = min(rows_cap, total_rows_rounded)

    n_rows_padded = pl.cdiv(n_rows, row_tile) * row_tile
    grid = (n_rows_padded // row_tile,)

    x_flat = x.reshape(-1)
    pad = n_rows_padded * lane_width - n_elems
    if pad:
        x_flat = jnp.concatenate([x_flat, jnp.zeros((pad,), dtype=x.dtype)])
    x2 = x_flat.reshape(n_rows_padded, lane_width)

    out2 = pl.pallas_call(
        _pe_add_kernel,
        out_shape=jax.ShapeDtypeStruct((n_rows_padded, lane_width), x.dtype),
        grid=grid,
        in_specs=[
            pl.BlockSpec((row_tile, lane_width), lambda i: (i, 0)),
            pl.BlockSpec((1, lane_width), lambda i: (0, 0)),  # constant block: fetched once
        ],
        out_specs=pl.BlockSpec((row_tile, lane_width), lambda i: (i, 0)),
        compiler_params=pltpu.CompilerParams(
            dimension_semantics=("parallel",),
            vmem_limit_bytes=32 * 1024 * 1024,
        ),
    )(x2, pe_slab)

    # TODO(synk): training-mode dropout (p=dropout_p) not implemented; eval-mode identity.
    return out2.reshape(-1)[:n_elems].reshape(S, B, D)


if __name__ == "__main__":
    key = jax.random.PRNGKey(0)
    MAX_LEN = 5000  # module default

    # Case 1: small canonical shape, exercise both the auto (early-out) path and
    # the forced Pallas path.
    S, B, D = 8, 2, 32
    x = jax.random.normal(key, (S, B, D), dtype=jnp.float32)
    pe = make_pe_buffer(D, max_len=MAX_LEN)
    ref = x + pe[S, :]

    out_auto = jax.block_until_ready(positional_encoding_forward(x, pe))
    out_kern = jax.block_until_ready(positional_encoding_forward(x, pe, force_pallas=True))
    assert out_auto.shape == (S, B, D) and out_kern.shape == (S, B, D)
    assert jnp.allclose(out_auto, ref, atol=1e-6), "auto path mismatch vs reference"
    assert jnp.allclose(out_kern, ref, atol=1e-6), "pallas path mismatch vs reference"

    # Case 2: odd row count -> exercises the padding / cdiv-grid path.
    S2, B2, D2 = 13, 3, 32
    x2 = jax.random.normal(jax.random.PRNGKey(1), (S2, B2, D2), dtype=jnp.float32)
    pe2 = make_pe_buffer(D2, max_len=MAX_LEN)
    ref2 = x2 + pe2[S2, :]
    out2 = jax.block_until_ready(positional_encoding_forward(x2, pe2, force_pallas=True))
    assert jnp.allclose(out2, ref2, atol=1e-6), "padded pallas path mismatch vs reference"

    print("KERNEL_OK")
</pallas_src>

<mosaic_0001>
module attributes {stable_mosaic.version = 11 : i64} {
  func.func @_pe_add_kernel(%arg0: i32, %arg1: memref<8x128xf32, #tpu.memory_space<vmem>>, %arg2: memref<1x128xf32, #tpu.memory_space<vmem>>, %arg3: memref<8x128xf32, #tpu.memory_space<vmem>>) attributes {dimension_semantics = [#tpu.dimension_semantics<parallel>], iteration_bounds = array<i64: 1>, scalar_prefetch = 0 : i64, scratch_operands = 0 : i64, tpu.core_type = #tpu.core_type<tc>, window_params = [{transform_indices = @transform_0, window_bounds = array<i64: 8, 128>}, {pipeline_mode = #tpu.pipeline_mode<synchronous>, transform_indices = @transform_1, window_bounds = array<i64: 1, 128>}, {transform_indices = @transform_2, window_bounds = array<i64: 8, 128>}]} {
    %c0 = arith.constant 0 : index
    %c0_0 = arith.constant 0 : index
    %0 = vector.load %arg1[%c0, %c0_0] : memref<8x128xf32, #tpu.memory_space<vmem>>, vector<8x128xf32>
    %c0_1 = arith.constant 0 : index
    %c0_2 = arith.constant 0 : index
    %1 = vector.load %arg2[%c0_1, %c0_2] : memref<1x128xf32, #tpu.memory_space<vmem>>, vector<1x128xf32>
    %2 = vector.broadcast %1 : vector<1x128xf32> to vector<8x128xf32>
    %3 = arith.addf %0, %2 : vector<8x128xf32>
    %c0_3 = arith.constant 0 : index
    %c0_4 = arith.constant 0 : index
    %4 = vector.load %arg3[%c0_3, %c0_4] : memref<8x128xf32, #tpu.memory_space<vmem>>, vector<8x128xf32>
    tpu.vector_store %arg3[%c0_3, %c0_4], %3 {strides = array<i32>} : memref<8x128xf32, #tpu.memory_space<vmem>>, vector<8x128xf32>,
    return
  }
  func.func @transform_0(%arg0: i32) -> (i32, i32) {
    %c0_i32 = arith.constant 0 : i32
    %c0_i32_0 = arith.constant 0 : i32
    return %arg0, %c0_i32 : i32, i32
  }
  func.func @transform_1(%arg0: i32) -> (i32, i32) {
    %c0_i32 = arith.constant 0 : i32
    %c0_i32_0 = arith.constant 0 : i32
    %c0_i32_1 = arith.constant 0 : i32
    return %c0_i32, %c0_i32_0 : i32, i32
  }
  func.func @transform_2(%arg0: i32) -> (i32, i32) {
    %c0_i32 = arith.constant 0 : i32
    %c0_i32_0 = arith.constant 0 : i32
    return %arg0, %c0_i32 : i32, i32
  }
}

</mosaic_0001>

<llo_original>
// kernel: tpu_custom_call.1
$region0: #{tpu_custom_call.1}
  #allocation0 [shape = 'u32[]', space=smem, size = 0x4, offset = 0x4, fixed_abs, tag = 'smem constant byte address 0x4 - core index']
  #allocation1 [shape = 'u32[144,128]{1,0:T(1,128)}', space=vmem, size = 0x12000, scoped, tag = 'internal scratch']
  %s0 = inlined_call_operand.hbm [shape: f32[8,128], index: 0, kind: input, shape index: {}]
  %s1 = inlined_call_operand.vmem [shape: f32[1,128], index: 1, kind: input, shape index: {}]
  %s2 = inlined_call_operand.hbm [shape: f32[8,128], index: 2, kind: output, shape index: {}]
  %s3 = sld [smem:[#allocation0]]
  $region22: #{tpu_custom_call.1} parent=0
    _
  %s5 = ssub.s32 1, %s3
  %s6 = scalar_select 0, %s5, %s3
  $region1: #{tpu_custom_call.1} parent=0
    #allocation2 [shape = 'u8[4096]{0}', space=vmem, size = 0x1000, scoped, tag = 'input window, operand 0, single buffered']
    #allocation3 [shape = 's32[1]{0}', space=sflag, size = 0x4, scoped, tag = 'scoped memory for tpu_custom_call.1']
    #allocation4 [shape = 's32[1]{0}', space=sflag, size = 0x4, scoped, tag = 'scoped memory for tpu_custom_call.1']
    #allocation5 [shape = 'u8[4096]{0}', space=vmem, size = 0x1000, scoped, tag = 'output window, operand 0, single buffered']
    %7 = vsyncpa [#allocation3], 0
    %8 = vsyncpa [#allocation4], 0
    // Predicated region
    $region2: #{tpu_custom_call.1} parent=1 // pred_check
      _
    $region3: #{tpu_custom_call.1} parent=1 // pred_check_branch
      %10 = sbr.rel (0) target = $region5
    $region4: #{tpu_custom_call.1} parent=1 // pred_region
      %s12 = ssub.s32 128, 128
      %13 = vsyncadd [#allocation3], %s12
      %s15 = sshll.u32 [#allocation2], 4
      %s16 = int_to_ptr.vmem [resolvable:$true] %s15
      %18 = dma.hbm_to_vmem [thread:$0]  %s0, 128, %s16, [#allocation3]
    $region5: #{tpu_custom_call.1} parent=1 // pred_fallthru
      _
    // Predicated region
    $region6: #{tpu_custom_call.1} parent=1 // pred_check
      _
    $region7: #{tpu_custom_call.1} parent=1 // pred_check_branch
      %20 = sbr.rel (0) target = $region9
    $region8: #{tpu_custom_call.1} parent=1 // pred_region
      _
    $region9: #{tpu_custom_call.1} parent=1 // pred_fallthru
      _
    // Predicated region
    $region10: #{tpu_custom_call.1} parent=1 // pred_check
      _
    $region11: #{tpu_custom_call.1} parent=1 // pred_check_branch
      %22 = sbr.rel (0) target = $region13
    $region12: #{tpu_custom_call.1} parent=1 // pred_region
      %23 = dma.done [#allocation3], 128
    $region13: #{tpu_custom_call.1} parent=1 // pred_fallthru
      _
    %v24 = vld [vmem:[#allocation2] sm:$0xff]
    %v25 = vld [vmem:[%s1] sm:$0x1]
    %v27 = vlaneseq
    %v28 = vshrl.u32 %v27, 7
    %v29 = vsub.s32 0, %v28
    %v30 = vrot.slane %v25, %v29
    %v32 = vadd.f32 %v24, %v30
    %33 = vst [vmem:[#allocation5] sm:$0xff] %v32
    // Predicated region
    $region14: #{tpu_custom_call.1} parent=1 // pred_check
      _
    $region15: #{tpu_custom_call.1} parent=1 // pred_check_branch
      %35 = sbr.rel (0) target = $region17
    $region16: #{tpu_custom_call.1} parent=1 // pred_region
      %s37 = ssub.s32 128, 128
      %38 = vsyncadd [#allocation4], %s37
      %s40 = sshll.u32 [#allocation5], 4
      %s41 = int_to_ptr.vmem [resolvable:$true] %s40
      %43 = dma.vmem_to_hbm [thread:$0]  %s41, 128, %s2, [#allocation4]
    $region17: #{tpu_custom_call.1} parent=1 // pred_fallthru
      _
    // Predicated region
    $region18: #{tpu_custom_call.1} parent=1 // pred_check
      _
    $region19: #{tpu_custom_call.1} parent=1 // pred_check_branch
      %45 = sbr.rel (0) target = $region21
    $region20: #{tpu_custom_call.1} parent=1 // pred_region
      %46 = dma.done [#allocation4], 128
    $region21: #{tpu_custom_call.1} parent=1 // pred_fallthru
      _
    %47 = vsyncpa [#allocation3], 1
    %48 = vsyncpa [#allocation4], 1

</llo_original>
